<compile_context>
chip_gen: v5e
topology: v5e:2x2
jax: 0.10.0
libtpu: 0.0.40
codegen_flags: <defaults>
</compile_context>

<pallas_src>
import functools

import jax
import jax.numpy as jnp
import numpy as np
from jax.experimental import pallas as pl
from jax.experimental.pallas import tpu as pltpu

_LANE = 128
_SUBLANE = 8
_MAX_SINGLE_BATCH_TILE = 512              # one batch tile up to this many rows
_H_TILE_VMEM_BUDGET = 40 * 1024 * 1024    # working-set budget (v7x 64 MiB safe)
_VMEM_LIMIT_BYTES = 48 * 1024 * 1024      # requested scoped VMEM (< v7x physical)


def _round_up(x, m):
    return (x + m - 1) // m * m


def _pick_h_tile(hp, k_total, w_itemsize, bt_max=_MAX_SINGLE_BATCH_TILE):
    """Largest hn in {512,256,128} dividing hp whose double-buffered per-step
    working set (weights dominate) fits the VMEM budget.  hp % 128 == 0."""
    for hn in (512, 256, 128):
        if hp % hn:
            continue
        w_tile = k_total * 4 * hn * w_itemsize + 4 * hn * 4   # Wx|Wh tile + bias
        act = bt_max * k_total * 4                            # x + h blocks (f32 bound)
        state = bt_max * hn * 4 * 3                           # c, h_out, c_out tiles
        if 2 * (w_tile + act + state) <= _H_TILE_VMEM_BUDGET:
            return hn
    return 128


def _sigmoid(v):
    # sigmoid(x) == 0.5 * tanh(0.5 * x) + 0.5  -> one EUP op per gate.
    return 0.5 * jnp.tanh(0.5 * v) + 0.5


# ----------------------------------------------------------------------------
# Single-step cell kernel (MyLSTM.forward)
# ----------------------------------------------------------------------------
def lstm_cell_kernel(x_ref, h_ref, c_ref, wx_ref, wh_ref, b_ref,
                     hout_ref, cout_ref):
    """One LSTM cell step for a (bt, hn) output tile.

    x_ref : (bt, isize)    inputs (cast to weight dtype in-kernel)
    h_ref : (bt, hsize)    previous hidden state
    c_ref : (bt, hn)       previous cell state slice (f32)
    wx_ref: (isize, 4*hn)  packed x->gate weights for this H tile, [f|i|o|c]
    wh_ref: (hsize, 4*hn)  packed h->gate weights for this H tile, [f|i|o|c]
    b_ref : (1, 4*hn)      packed bias (bx + bh, f32)
    """
    hn = hout_ref.shape[-1]
    w_dt = wx_ref.dtype
    gates = (
        jnp.dot(x_ref[...].astype(w_dt), wx_ref[...],
                preferred_element_type=jnp.float32)
        + jnp.dot(h_ref[...].astype(w_dt), wh_ref[...],
                  preferred_element_type=jnp.float32)
        + b_ref[...]
    )
    fgt = _sigmoid(gates[:, 0 * hn:1 * hn])
    ipt = _sigmoid(gates[:, 1 * hn:2 * hn])
    opt = _sigmoid(gates[:, 2 * hn:3 * hn])
    gcl = jnp.tanh(gates[:, 3 * hn:4 * hn])

    cell = fgt * c_ref[...] + ipt * gcl
    hout_ref[...] = (opt * jnp.tanh(cell)).astype(hout_ref.dtype)
    cout_ref[...] = cell                                   # cell state stays f32


@jax.jit
def lstm_cell(x, hidden, params):
    """MyLSTM.forward: returns (activout, (h_new, c_new)).

    h_new / activout come back in x.dtype; the cell state is kept in f32."""
    h, c = hidden
    wx, wh, b = params["wx"], params["wh"], params["b"]
    B, isize = x.shape
    hsize = h.shape[-1]
    hp = wx.shape[1] // 4
    hn = _pick_h_tile(hp, isize + hsize, wx.dtype.itemsize)

    # Batch tiling: single tile when it fits (one weight pass); otherwise
    # 256-row tiles (two 128-row MXU waves on v6e/v7x) with batch as the
    # INNER grid axis so the weight tile stays VMEM-resident across tiles.
    bp = _round_up(B, _SUBLANE)
    if bp <= _MAX_SINGLE_BATCH_TILE:
        bt = bp
    else:
        bt = 256
        bp = _round_up(B, bt)
    nb = bp // bt

    x_p = jnp.pad(x, ((0, bp - B), (0, 0)))
    h_p = jnp.pad(h, ((0, bp - B), (0, 0)))
    c_p = jnp.pad(c.astype(jnp.float32), ((0, bp - B), (0, hp - hsize)))

    grid = (hp // hn, nb)        # batch innermost -> weights reused across batch
    hout, cout = pl.pallas_call(
        lstm_cell_kernel,
        out_shape=(
            jax.ShapeDtypeStruct((bp, hp), x.dtype),       # h_new in x.dtype
            jax.ShapeDtypeStruct((bp, hp), jnp.float32),   # cell state in f32
        ),
        grid=grid,
        in_specs=[
            pl.BlockSpec((bt, isize), lambda n, i: (i, 0)),       # x
            pl.BlockSpec((bt, hsize), lambda n, i: (i, 0)),       # h
            pl.BlockSpec((bt, hn), lambda n, i: (i, n)),          # c
            pl.BlockSpec((isize, 4 * hn), lambda n, i: (0, n)),   # Wx (per H tile)
            pl.BlockSpec((hsize, 4 * hn), lambda n, i: (0, n)),   # Wh (per H tile)
            pl.BlockSpec((1, 4 * hn), lambda n, i: (0, n)),       # bias
        ],
        out_specs=(
            pl.BlockSpec((bt, hn), lambda n, i: (i, n)),          # h_new
            pl.BlockSpec((bt, hn), lambda n, i: (i, n)),          # c_new (f32)
        ),
        compiler_params=pltpu.CompilerParams(
            dimension_semantics=("parallel", "parallel"),
            vmem_limit_bytes=_VMEM_LIMIT_BYTES,
        ),
    )(x_p, h_p, c_p, wx, wh, b)

    h_new = hout[:B, :hsize]
    c_new = cout[:B, :hsize]
    return h_new, (h_new, c_new)


# ----------------------------------------------------------------------------
# In-kernel time loop over a sequence (weights loaded once, h/c in VMEM)
# ----------------------------------------------------------------------------
def lstm_seq_kernel(x_ref, h0_ref, c0_ref, wx_ref, wh_ref, b_ref,
                    hseq_ref, cout_ref, h_scr, c_scr, *, hn):
    """One timestep of the in-kernel sequence loop (grid axis 0 = T).

    Weights/bias use constant index_maps -> DMA'd once for the whole
    sequence; h/c are carried across timesteps in f32 VMEM scratch."""
    t = pl.program_id(0)

    @pl.when(t == 0)
    def _init():
        h_scr[...] = h0_ref[...]
        c_scr[...] = c0_ref[...]

    w_dt = wx_ref.dtype
    gates = (
        jnp.dot(x_ref[...].astype(w_dt), wx_ref[...],
                preferred_element_type=jnp.float32)
        + jnp.dot(h_scr[...].astype(w_dt), wh_ref[...],
                  preferred_element_type=jnp.float32)
        + b_ref[...]
    )

    hp = h_scr.shape[-1]
    for j in range(hp // hn):        # static, small; gate slices are lane-aligned
        g = gates[:, j * 4 * hn:(j + 1) * 4 * hn]
        fgt = _sigmoid(g[:, 0 * hn:1 * hn])
        ipt = _sigmoid(g[:, 1 * hn:2 * hn])
        opt = _sigmoid(g[:, 2 * hn:3 * hn])
        gcl = jnp.tanh(g[:, 3 * hn:4 * hn])
        cell = fgt * c_scr[:, j * hn:(j + 1) * hn] + ipt * gcl
        hact = opt * jnp.tanh(cell)
        c_scr[:, j * hn:(j + 1) * hn] = cell
        h_scr[:, j * hn:(j + 1) * hn] = hact
        hseq_ref[:, j * hn:(j + 1) * hn] = hact.astype(hseq_ref.dtype)

    cout_ref[...] = c_scr[...]       # constant block index -> written back once


@jax.jit
def lstm_sequence(xs, hidden, params):
    """Step MyLSTM over a sequence with the time loop inside the kernel.

    xs: (T, B, isize).  Returns (h_seq of shape (T, B, hsize) in xs.dtype,
    (h_T, c_T)) with the cell state kept in f32."""
    h0, c0 = hidden
    T, B, isize = xs.shape
    hsize = h0.shape[-1]
    wx, wh, b = params["wx"], params["wh"], params["b"]
    hp = wx.shape[1] // 4
    hn = _pick_h_tile(hp, isize + hsize, wx.dtype.itemsize)

    bp = _round_up(B, _SUBLANE)
    xs_p = jnp.pad(xs, ((0, 0), (0, bp - B), (0, 0)))
    h0_p = jnp.pad(h0.astype(jnp.float32), ((0, bp - B), (0, hp - hsize)))
    c0_p = jnp.pad(c0.astype(jnp.float32), ((0, bp - B), (0, hp - hsize)))

    # The recurrence needs the full weight set + h/c resident in VMEM.
    need = ((isize + hsize) * 4 * hp * wx.dtype.itemsize + 4 * hp * 4
            + 2 * bp * isize * xs.dtype.itemsize          # x_t (double-buffered)
            + 2 * bp * hp * xs.dtype.itemsize             # h_seq out (double-buffered)
            + 5 * bp * hp * 4)                            # h0, c0, c_out, h/c scratch
    if need > _H_TILE_VMEM_BUDGET:
        # TODO(synk): H-tile the recurrence (cross-tile h exchange) for very
        # large hsize instead of bailing out.
        raise ValueError("lstm_sequence: weights + state do not fit in VMEM")

    hseq, cout = pl.pallas_call(
        functools.partial(lstm_seq_kernel, hn=hn),
        out_shape=(
            jax.ShapeDtypeStruct((T, bp, hp), xs.dtype),
            jax.ShapeDtypeStruct((bp, hp), jnp.float32),
        ),
        grid=(T,),
        in_specs=[
            pl.BlockSpec((None, bp, isize), lambda t: (t, 0, 0)),   # x_t
            pl.BlockSpec((bp, hp), lambda t: (0, 0)),               # h0
            pl.BlockSpec((bp, hp), lambda t: (0, 0)),               # c0
            pl.BlockSpec((isize, 4 * hp), lambda t: (0, 0)),        # Wx (loaded once)
            pl.BlockSpec((hsize, 4 * hp), lambda t: (0, 0)),        # Wh (loaded once)
            pl.BlockSpec((1, 4 * hp), lambda t: (0, 0)),            # bias
        ],
        out_specs=(
            pl.BlockSpec((None, bp, hp), lambda t: (t, 0, 0)),      # h_t sequence
            pl.BlockSpec((bp, hp), lambda t: (0, 0)),               # c_T
        ),
        scratch_shapes=[
            pltpu.VMEM((bp, hp), jnp.float32),                      # h carry
            pltpu.VMEM((bp, hp), jnp.float32),                      # c carry
        ],
        compiler_params=pltpu.CompilerParams(
            dimension_semantics=("arbitrary",),                     # recurrent over T
            vmem_limit_bytes=_VMEM_LIMIT_BYTES,
        ),
    )(xs_p, h0_p, c0_p, wx, wh, b)

    h_seq = hseq[:, :B, :hsize]
    h_T = h_seq[-1]
    c_T = cout[:B, :hsize]
    return h_seq, (h_T, c_T)


# ----------------------------------------------------------------------------
# Parameters & pure-JAX reference
# ----------------------------------------------------------------------------
def init_linear(key, in_features, out_features):
    """PyTorch nn.Linear default init: U(-1/sqrt(in), 1/sqrt(in))."""
    kw, kb = jax.random.split(key)
    bound = 1.0 / np.sqrt(in_features)
    w = jax.random.uniform(kw, (out_features, in_features), jnp.float32,
                           -bound, bound)
    bias = jax.random.uniform(kb, (out_features,), jnp.float32, -bound, bound)
    return w, bias


def make_params(key, isize, hsize, dtype=jnp.bfloat16):
    """Build MyLSTM's 8 Linear layers and pack them for the kernels.

    Packed layout (gate order f, i, o, c), tiled along H in hn-wide blocks so
    every gate slice in the kernel is lane-aligned:
      wx: (isize, 4*Hp)   columns = per H tile blocks of [f|i|o|c]
      wh: (hsize, 4*Hp)
      b : (1, 4*Hp)       bx + bh, f32
    Weights are stored in `dtype` (bf16 default: weight bytes are the
    HBM-bandwidth bottleneck; MXU accumulates in f32 either way).

    Returns (params_dict, raw) where raw holds the 8 f32 (w, b) pairs for the
    pure-JAX reference.
    """
    ks = jax.random.split(key, 8)
    x2 = [init_linear(ks[g], isize, hsize) for g in range(4)]       # f, i, o, c
    h2 = [init_linear(ks[4 + g], hsize, hsize) for g in range(4)]   # f, i, o, c

    hp = _round_up(hsize, _LANE)
    hn = _pick_h_tile(hp, isize + hsize, np.dtype(dtype).itemsize)
    n_tiles = hp // hn

    wx_gates, wh_gates, b_gates = [], [], []
    for (wxg, bxg), (whg, bhg) in zip(x2, h2):
        wxt = jnp.pad(wxg.T, ((0, 0), (0, hp - hsize)))             # (isize, Hp)
        wht = jnp.pad(whg.T, ((0, 0), (0, hp - hsize)))             # (hsize, Hp)
        bg = jnp.pad(bxg + bhg, ((0, hp - hsize),))                 # (Hp,)
        wx_gates.append(wxt.reshape(isize, n_tiles, hn))
        wh_gates.append(wht.reshape(hsize, n_tiles, hn))
        b_gates.append(bg.reshape(n_tiles, hn))

    # Interleave so each H tile's 4 gates are contiguous: (., n_tiles, 4, hn).
    wx_packed = jnp.stack(wx_gates, axis=2).reshape(isize, 4 * hp).astype(dtype)
    wh_packed = jnp.stack(wh_gates, axis=2).reshape(hsize, 4 * hp).astype(dtype)
    b_packed = jnp.stack(b_gates, axis=1).reshape(1, 4 * hp).astype(jnp.float32)
    params = {"wx": wx_packed, "wh": wh_packed, "b": b_packed}
    return params, (x2, h2)


def reference_step(x, h, c, raw):
    """Pure-JAX mirror of MyLSTM.forward (single step)."""
    x2, h2 = raw

    def lin(inp, wb):
        w, b = wb
        return inp @ w.T + b

    f = jax.nn.sigmoid(lin(x, x2[0]) + lin(h, h2[0]))
    i = jax.nn.sigmoid(lin(x, x2[1]) + lin(h, h2[1]))
    o = jax.nn.sigmoid(lin(x, x2[2]) + lin(h, h2[2]))
    g = jnp.tanh(lin(x, x2[3]) + lin(h, h2[3]))
    cell = f * c + i * g
    hact = o * jnp.tanh(cell)
    return hact, cell


if __name__ == "__main__":
    key = jax.random.PRNGKey(0)

    # ---- single-step cell (faithful MyLSTM.forward) ----
    step_configs = [(2, 16, 32), (8, 48, 160), (16, 32, 320)]
    for B, isize, hsize in step_configs:
        kx, kh, kc, kparams, key = jax.random.split(key, 5)
        x = jax.random.normal(kx, (B, isize), jnp.float32)
        h0 = jax.random.normal(kh, (B, hsize), jnp.float32)
        c0 = jax.random.normal(kc, (B, hsize), jnp.float32)

        # f32 weights: exact-semantics check.
        params32, raw = make_params(kparams, isize, hsize, dtype=jnp.float32)
        h_ref, c_ref = reference_step(x, h0, c0, raw)
        activout, (h1, c1) = lstm_cell(x, (h0, c0), params32)
        jax.block_until_ready((activout, h1, c1))
        np.testing.assert_allclose(np.asarray(activout), np.asarray(h_ref),
                                   rtol=2e-5, atol=2e-5)
        np.testing.assert_allclose(np.asarray(c1), np.asarray(c_ref),
                                   rtol=2e-5, atol=2e-5)

        # bf16 weights (default path): halves the bandwidth-bound weight bytes.
        params16, _ = make_params(kparams, isize, hsize)   # same key -> same weights
        act16, (h1b, c1b) = lstm_cell(x, (h0, c0), params16)
        jax.block_until_ready((act16, h1b, c1b))
        np.testing.assert_allclose(np.asarray(act16), np.asarray(h_ref),
                                   rtol=0, atol=5e-2)
        np.testing.assert_allclose(np.asarray(c1b), np.asarray(c_ref),
                                   rtol=0, atol=5e-2)

    # ---- in-kernel time loop over a short sequence ----
    T, B, isize, hsize = 6, 4, 32, 128
    kx, kh, kc, kparams, key = jax.random.split(key, 5)
    xs = jax.random.normal(kx, (T, B, isize), jnp.float32)
    h0 = jax.random.normal(kh, (B, hsize), jnp.float32)
    c0 = jax.random.normal(kc, (B, hsize), jnp.float32)

    params32, raw = make_params(kparams, isize, hsize, dtype=jnp.float32)
    h, c = h0, c0
    href_seq = []
    for t in range(T):
        h, c = reference_step(xs[t], h, c, raw)
        href_seq.append(h)
    href_seq = jnp.stack(href_seq)

    hseq, (hT, cT) = lstm_sequence(xs, (h0, c0), params32)
    jax.block_until_ready((hseq, hT, cT))
    np.testing.assert_allclose(np.asarray(hseq), np.asarray(href_seq),
                               rtol=1e-4, atol=5e-4)
    np.testing.assert_allclose(np.asarray(cT), np.asarray(c),
                               rtol=1e-4, atol=5e-4)

    params16, _ = make_params(kparams, isize, hsize)       # bf16 weights
    hseq16, (hT16, cT16) = lstm_sequence(xs, (h0, c0), params16)
    jax.block_until_ready((hseq16, hT16, cT16))
    np.testing.assert_allclose(np.asarray(hseq16), np.asarray(href_seq),
                               rtol=0, atol=1e-1)
    np.testing.assert_allclose(np.asarray(cT16), np.asarray(c),
                               rtol=0, atol=1e-1)

    print("KERNEL_OK")
</pallas_src>

<mosaic_0001>
module attributes {stable_mosaic.version = 11 : i64} {
  func.func @lstm_cell_kernel(%arg0: i32, %arg1: i32, %arg2: memref<8x16xf32, #tpu.memory_space<vmem>>, %arg3: memref<8x32xf32, #tpu.memory_space<vmem>>, %arg4: memref<8x128xf32, #tpu.memory_space<vmem>>, %arg5: memref<16x512xf32, #tpu.memory_space<vmem>>, %arg6: memref<32x512xf32, #tpu.memory_space<vmem>>, %arg7: memref<1x512xf32, #tpu.memory_space<vmem>>, %arg8: memref<8x128xf32, #tpu.memory_space<vmem>>, %arg9: memref<8x128xf32, #tpu.memory_space<vmem>>) attributes {dimension_semantics = [#tpu.dimension_semantics<parallel>, #tpu.dimension_semantics<parallel>], iteration_bounds = array<i64: 1, 1>, scalar_prefetch = 0 : i64, scratch_operands = 0 : i64, tpu.core_type = #tpu.core_type<tc>, window_params = [{transform_indices = @transform_0, window_bounds = array<i64: 8, 16>}, {transform_indices = @transform_1, window_bounds = array<i64: 8, 32>}, {transform_indices = @transform_2, window_bounds = array<i64: 8, 128>}, {transform_indices = @transform_3, window_bounds = array<i64: 16, 512>}, {transform_indices = @transform_4, window_bounds = array<i64: 32, 512>}, {transform_indices = @transform_5, window_bounds = array<i64: 1, 512>}, {transform_indices = @transform_6, window_bounds = array<i64: 8, 128>}, {transform_indices = @transform_7, window_bounds = array<i64: 8, 128>}]} {
    %c0 = arith.constant 0 : index
    %c0_0 = arith.constant 0 : index
    %0 = vector.load %arg2[%c0, %c0_0] : memref<8x16xf32, #tpu.memory_space<vmem>>, vector<8x16xf32>
    %c0_1 = arith.constant 0 : index
    %c0_2 = arith.constant 0 : index
    %1 = vector.load %arg5[%c0_1, %c0_2] : memref<16x512xf32, #tpu.memory_space<vmem>>, vector<16x512xf32>
    %cst = arith.constant dense<0.000000e+00> : vector<8x512xf32>
    %2 = tpu.matmul %0, %1, %cst {dimension_numbers = #tpu.dot_dimension_numbers<[1], [0], [0], [1], [0, 0, 1, 1], [], []>} : vector<8x16xf32>, vector<16x512xf32>, vector<8x512xf32> -> vector<8x512xf32>
    %c0_3 = arith.constant 0 : index
    %c0_4 = arith.constant 0 : index
    %3 = vector.load %arg3[%c0_3, %c0_4] : memref<8x32xf32, #tpu.memory_space<vmem>>, vector<8x32xf32>
    %c0_5 = arith.constant 0 : index
    %c0_6 = arith.constant 0 : index
    %4 = vector.load %arg6[%c0_5, %c0_6] : memref<32x512xf32, #tpu.memory_space<vmem>>, vector<32x512xf32>
    %cst_7 = arith.constant dense<0.000000e+00> : vector<8x512xf32>
    %5 = tpu.matmul %3, %4, %cst_7 {dimension_numbers = #tpu.dot_dimension_numbers<[1], [0], [0], [1], [0, 0, 1, 1], [], []>} : vector<8x32xf32>, vector<32x512xf32>, vector<8x512xf32> -> vector<8x512xf32>
    %6 = arith.addf %2, %5 : vector<8x512xf32>
    %c0_8 = arith.constant 0 : index
    %c0_9 = arith.constant 0 : index
    %7 = vector.load %arg7[%c0_8, %c0_9] : memref<1x512xf32, #tpu.memory_space<vmem>>, vector<1x512xf32>
    %8 = vector.broadcast %7 : vector<1x512xf32> to vector<8x512xf32>
    %9 = arith.addf %6, %8 : vector<8x512xf32>
    %10 = vector.extract_strided_slice %9 {offsets = [0, 0], sizes = [8, 128], strides = [1, 1]} : vector<8x512xf32> to vector<8x128xf32>
    %cst_10 = arith.constant 5.000000e-01 : f32
    %11 = vector.broadcast %cst_10 : f32 to vector<8x128xf32>
    %12 = arith.mulf %11, %10 : vector<8x128xf32>
    %13 = math.tanh %12 : vector<8x128xf32>
    %cst_11 = arith.constant 5.000000e-01 : f32
    %14 = vector.broadcast %cst_11 : f32 to vector<8x128xf32>
    %15 = arith.mulf %14, %13 : vector<8x128xf32>
    %cst_12 = arith.constant 5.000000e-01 : f32
    %16 = vector.broadcast %cst_12 : f32 to vector<8x128xf32>
    %17 = arith.addf %15, %16 : vector<8x128xf32>
    %18 = vector.extract_strided_slice %9 {offsets = [0, 128], sizes = [8, 128], strides = [1, 1]} : vector<8x512xf32> to vector<8x128xf32>
    %cst_13 = arith.constant 5.000000e-01 : f32
    %19 = vector.broadcast %cst_13 : f32 to vector<8x128xf32>
    %20 = arith.mulf %19, %18 : vector<8x128xf32>
    %21 = math.tanh %20 : vector<8x128xf32>
    %cst_14 = arith.constant 5.000000e-01 : f32
    %22 = vector.broadcast %cst_14 : f32 to vector<8x128xf32>
    %23 = arith.mulf %22, %21 : vector<8x128xf32>
    %cst_15 = arith.constant 5.000000e-01 : f32
    %24 = vector.broadcast %cst_15 : f32 to vector<8x128xf32>
    %25 = arith.addf %23, %24 : vector<8x128xf32>
    %26 = vector.extract_strided_slice %9 {offsets = [0, 256], sizes = [8, 128], strides = [1, 1]} : vector<8x512xf32> to vector<8x128xf32>
    %cst_16 = arith.constant 5.000000e-01 : f32
    %27 = vector.broadcast %cst_16 : f32 to vector<8x128xf32>
    %28 = arith.mulf %27, %26 : vector<8x128xf32>
    %29 = math.tanh %28 : vector<8x128xf32>
    %cst_17 = arith.constant 5.000000e-01 : f32
    %30 = vector.broadcast %cst_17 : f32 to vector<8x128xf32>
    %31 = arith.mulf %30, %29 : vector<8x128xf32>
    %cst_18 = arith.constant 5.000000e-01 : f32
    %32 = vector.broadcast %cst_18 : f32 to vector<8x128xf32>
    %33 = arith.addf %31, %32 : vector<8x128xf32>
    %34 = vector.extract_strided_slice %9 {offsets = [0, 384], sizes = [8, 128], strides = [1, 1]} : vector<8x512xf32> to vector<8x128xf32>
    %35 = math.tanh %34 : vector<8x128xf32>
    %c0_19 = arith.constant 0 : index
    %c0_20 = arith.constant 0 : index
    %36 = vector.load %arg4[%c0_19, %c0_20] : memref<8x128xf32, #tpu.memory_space<vmem>>, vector<8x128xf32>
    %37 = arith.mulf %17, %36 : vector<8x128xf32>
    %38 = arith.mulf %25, %35 : vector<8x128xf32>
    %39 = arith.addf %37, %38 : vector<8x128xf32>
    %40 = math.tanh %39 : vector<8x128xf32>
    %41 = arith.mulf %33, %40 : vector<8x128xf32>
    %c0_21 = arith.constant 0 : index
    %c0_22 = arith.constant 0 : index
    %42 = vector.load %arg8[%c0_21, %c0_22] : memref<8x128xf32, #tpu.memory_space<vmem>>, vector<8x128xf32>
    tpu.vector_store %arg8[%c0_21, %c0_22], %41 {strides = array<i32>} : memref<8x128xf32, #tpu.memory_space<vmem>>, vector<8x128xf32>,
    %c0_23 = arith.constant 0 : index
    %c0_24 = arith.constant 0 : index
    %43 = vector.load %arg9[%c0_23, %c0_24] : memref<8x128xf32, #tpu.memory_space<vmem>>, vector<8x128xf32>
    tpu.vector_store %arg9[%c0_23, %c0_24], %39 {strides = array<i32>} : memref<8x128xf32, #tpu.memory_space<vmem>>, vector<8x128xf32>,
    return
  }
  func.func @transform_0(%arg0: i32, %arg1: i32) -> (i32, i32) {
    %c0_i32 = arith.constant 0 : i32
    %c0_i32_0 = arith.constant 0 : i32
    return %arg1, %c0_i32 : i32, i32
  }
  func.func @transform_1(%arg0: i32, %arg1: i32) -> (i32, i32) {
    %c0_i32 = arith.constant 0 : i32
    %c0_i32_0 = arith.constant 0 : i32
    return %arg1, %c0_i32 : i32, i32
  }
  func.func @transform_2(%arg0: i32, %arg1: i32) -> (i32, i32) {
    %c0_i32 = arith.constant 0 : i32
    return %arg1, %arg0 : i32, i32
  }
  func.func @transform_3(%arg0: i32, %arg1: i32) -> (i32, i32) {
    %c0_i32 = arith.constant 0 : i32
    %c0_i32_0 = arith.constant 0 : i32
    return %c0_i32, %arg0 : i32, i32
  }
  func.func @transform_4(%arg0: i32, %arg1: i32) -> (i32, i32) {
    %c0_i32 = arith.constant 0 : i32
    %c0_i32_0 = arith.constant 0 : i32
    return %c0_i32, %arg0 : i32, i32
  }
  func.func @transform_5(%arg0: i32, %arg1: i32) -> (i32, i32) {
    %c0_i32 = arith.constant 0 : i32
    %c0_i32_0 = arith.constant 0 : i32
    return %c0_i32, %arg0 : i32, i32
  }
  func.func @transform_6(%arg0: i32, %arg1: i32) -> (i32, i32) {
    %c0_i32 = arith.constant 0 : i32
    return %arg1, %arg0 : i32, i32
  }
  func.func @transform_7(%arg0: i32, %arg1: i32) -> (i32, i32) {
    %c0_i32 = arith.constant 0 : i32
    return %arg1, %arg0 : i32, i32
  }
}

</mosaic_0001>

<llo_original>
// kernel: lstm_cell.1
$region0: #{lstm_cell.1}
  #allocation0 [shape = 'u32[]', space=smem, size = 0x4, offset = 0x4, fixed_abs, tag = 'smem constant byte address 0x4 - core index']
  #allocation1 [shape = 'u32[72,128]{1,0:T(1,128)}', space=vmem, size = 0x9000, scoped, tag = 'internal scratch']
  %s0 = inlined_call_operand.vmem [shape: f32[8,16], index: 0, kind: input, shape index: {}]
  %s1 = inlined_call_operand.vmem [shape: f32[8,32], index: 1, kind: input, shape index: {}]
  %s2 = inlined_call_operand.vmem [shape: f32[8,128], index: 2, kind: input, shape index: {}]
  %s3 = inlined_call_operand.hbm [shape: f32[16,512], index: 3, kind: input, shape index: {}]
  %s4 = inlined_call_operand.hbm [shape: f32[32,512], index: 4, kind: input, shape index: {}]
  %s5 = inlined_call_operand.vmem [shape: f32[1,512], index: 5, kind: input, shape index: {}]
  %s6 = inlined_call_operand.vmem [shape: f32[8,128], index: 6, kind: output, shape index: {0}]
  %s7 = inlined_call_operand.vmem [shape: f32[8,128], index: 7, kind: output, shape index: {1}]
  %8 = xla_tuple %s6, %s7
  %s9 = sld [smem:[#allocation0]]
  $region50: #{lstm_cell.1} parent=0
    _
  %s11 = ssub.s32 1, %s9
  %s12 = scalar_select 0, %s11, %s9
  $region1: #{lstm_cell.1} parent=0
    #allocation2 [shape = 'u8[32768]{0}', space=vmem, size = 0x8000, scoped, tag = 'input window, operand 3, single buffered']
    #allocation3 [shape = 's32[1]{0}', space=sflag, size = 0x4, scoped, tag = 'scoped memory for lstm_cell.1']
    #allocation4 [shape = 'u8[65536]{0}', space=vmem, size = 0x10000, scoped, tag = 'input window, operand 4, single buffered']
    #allocation5 [shape = 's32[1]{0}', space=sflag, size = 0x4, scoped, tag = 'scoped memory for lstm_cell.1']
    %13 = vsyncpa [#allocation3], 0
    %14 = vsyncpa [#allocation5], 0
    // Predicated region
    $region2: #{lstm_cell.1} parent=1 // pred_check
      _
    $region3: #{lstm_cell.1} parent=1 // pred_check_branch
      %16 = sbr.rel (0) target = $region5
    $region4: #{lstm_cell.1} parent=1 // pred_region
      _
    $region5: #{lstm_cell.1} parent=1 // pred_fallthru
      _
    // Predicated region
    $region6: #{lstm_cell.1} parent=1 // pred_check
      _
    $region7: #{lstm_cell.1} parent=1 // pred_check_branch
      %18 = sbr.rel (0) target = $region9
    $region8: #{lstm_cell.1} parent=1 // pred_region
      _
    $region9: #{lstm_cell.1} parent=1 // pred_fallthru
      _
    // Predicated region
    $region10: #{lstm_cell.1} parent=1 // pred_check
      _
    $region11: #{lstm_cell.1} parent=1 // pred_check_branch
      %20 = sbr.rel (0) target = $region13
    $region12: #{lstm_cell.1} parent=1 // pred_region
      _
    $region13: #{lstm_cell.1} parent=1 // pred_fallthru
      _
    // Predicated region
    $region14: #{lstm_cell.1} parent=1 // pred_check
      _
    $region15: #{lstm_cell.1} parent=1 // pred_check_branch
      %22 = sbr.rel (0) target = $region17
    $region16: #{lstm_cell.1} parent=1 // pred_region
      %24 = vsyncadd [#allocation3], 0
      %s25 = sshll.u32 %s3, 4
      %s26 = int_to_ptr.hbm [resolvable:$true] %s25
      %s27 = sshll.u32 [#allocation2], 4
      %s28 = int_to_ptr.vmem [resolvable:$true] %s27
      %33 = dma.hbm_to_vmem [thread:$0]  %s26, 1024, %s28, [#allocation3], 512, 512, 32
    $region17: #{lstm_cell.1} parent=1 // pred_fallthru
      _
    // Predicated region
    $region18: #{lstm_cell.1} parent=1 // pred_check
      _
    $region19: #{lstm_cell.1} parent=1 // pred_check_branch
      %35 = sbr.rel (0) target = $region21
    $region20: #{lstm_cell.1} parent=1 // pred_region
      %37 = vsyncadd [#allocation5], 0
      %s38 = sshll.u32 %s4, 4
      %s39 = int_to_ptr.hbm [resolvable:$true] %s38
      %s40 = sshll.u32 [#allocation4], 4
      %s41 = int_to_ptr.vmem [resolvable:$true] %s40
      %46 = dma.hbm_to_vmem [thread:$0]  %s39, 2048, %s41, [#allocation5], 512, 512, 32
    $region21: #{lstm_cell.1} parent=1 // pred_fallthru
      _
    // Predicated region
    $region22: #{lstm_cell.1} parent=1 // pred_check
      _
    $region23: #{lstm_cell.1} parent=1 // pred_check_branch
      %48 = sbr.rel (0) target = $region25
    $region24: #{lstm_cell.1} parent=1 // pred_region
      _
    $region25: #{lstm_cell.1} parent=1 // pred_fallthru
      _
    // Predicated region
    $region26: #{lstm_cell.1} parent=1 // pred_check
      _
    $region27: #{lstm_cell.1} parent=1 // pred_check_branch
      %50 = sbr.rel (0) target = $region29
    $region28: #{lstm_cell.1} parent=1 // pred_region
      %52 = dma.done [#allocation3], 1024
    $region29: #{lstm_cell.1} parent=1 // pred_fallthru
      _
    // Predicated region
    $region30: #{lstm_cell.1} parent=1 // pred_check
      _
    $region31: #{lstm_cell.1} parent=1 // pred_check_branch
      %54 = sbr.rel (0) target = $region33
    $region32: #{lstm_cell.1} parent=1 // pred_region
      %56 = dma.done [#allocation5], 2048
    $region33: #{lstm_cell.1} parent=1 // pred_fallthru
      _
    %v57 = vld [vmem:[%s0] sm:$0xff]
    %v58 = vld [vmem:[#allocation2] sm:$0xff]
    %v59 = vld [vmem:[#allocation2 + $0x8] sm:$0xff]
    %v60 = vld [vmem:[#allocation2 + $0x10] sm:$0xff]
    %v61 = vld [vmem:[#allocation2 + $0x18] sm:$0xff]
    %v62 = vld [vmem:[#allocation2 + $0x20] sm:$0xff]
    %v63 = vld [vmem:[#allocation2 + $0x28] sm:$0xff]
    %v64 = vld [vmem:[#allocation2 + $0x30] sm:$0xff]
    %v65 = vld [vmem:[#allocation2 + $0x38] sm:$0xff]
    %v66 = vld [vmem:[%s1] sm:$0xff]
    %v67 = vld [vmem:[#allocation4] sm:$0xff]
    %v68 = vld [vmem:[#allocation4 + $0x8] sm:$0xff]
    %v69 = vld [vmem:[#allocation4 + $0x10] sm:$0xff]
    %v70 = vld [vmem:[#allocation4 + $0x18] sm:$0xff]
    %v71 = vld [vmem:[#allocation4 + $0x20] sm:$0xff]
    %v72 = vld [vmem:[#allocation4 + $0x28] sm:$0xff]
    %v73 = vld [vmem:[#allocation4 + $0x30] sm:$0xff]
    %v74 = vld [vmem:[#allocation4 + $0x38] sm:$0xff]
    %v75 = vld [vmem:[#allocation4 + $0x40] sm:$0xff]
    %v76 = vld [vmem:[#allocation4 + $0x48] sm:$0xff]
    %v77 = vld [vmem:[#allocation4 + $0x50] sm:$0xff]
    %v78 = vld [vmem:[#allocation4 + $0x58] sm:$0xff]
    %v79 = vld [vmem:[#allocation4 + $0x60] sm:$0xff]
    %v80 = vld [vmem:[#allocation4 + $0x68] sm:$0xff]
    %v81 = vld [vmem:[#allocation4 + $0x70] sm:$0xff]
    %v82 = vld [vmem:[#allocation4 + $0x78] sm:$0xff]
    %vm83 = vcmask 261120
    %v85 = vsel %vm83, %v66, 0
    %87 = vmatpush.msra.mxu0 0.0
    %88 = vmatpush.msra.mxu0 0.0
    %89 = vmatpush.msra.mxu0 0.0
    %90 = vmatpush.msra.mxu0 0.0
    %91 = vmatpush.msra.mxu0 0.0
    %92 = vmatpush.msra.mxu0 0.0
    %93 = vmatpush.msra.mxu0 0.0
    %94 = vmatpush.msra.mxu0 0.0
    %95 = vmatpush.msra.mxu0 0.0
    %96 = vmatpush.msra.mxu0 0.0
    %97 = vmatpush.msra.mxu0 0.0
    %98 = vmatpush.msra.mxu0 0.0
    %99 = vmatpush.msra.mxu0 %v79
    %100 = vmatpush.msra.mxu0 %v75
    %101 = vmatpush.msra.mxu0 %v71
    %102 = vmatpush.msra.mxu0 %v67
    %103 = vmatmul.f32.gmra.mxu0 %v85
    %v104 = vpop.f32.mrf.mxu0
    %v105 = vadd.f32 0.0, %v104
    %106 = vdwg.mxu0
    %107 = vmatpush.msra.mxu0 0.0
    %108 = vmatpush.msra.mxu0 0.0
    %109 = vmatpush.msra.mxu0 0.0
    %110 = vmatpush.msra.mxu0 0.0
    %111 = vmatpush.msra.mxu0 0.0
    %112 = vmatpush.msra.mxu0 0.0
    %113 = vmatpush.msra.mxu0 0.0
    %114 = vmatpush.msra.mxu0 0.0
    %115 = vmatpush.msra.mxu0 0.0
    %116 = vmatpush.msra.mxu0 0.0
    %117 = vmatpush.msra.mxu0 0.0
    %118 = vmatpush.msra.mxu0 0.0
    %119 = vmatpush.msra.mxu0 %v80
    %120 = vmatpush.msra.mxu0 %v76
    %121 = vmatpush.msra.mxu0 %v72
    %122 = vmatpush.msra.mxu0 %v68
    %123 = vmatmul.f32.gmra.mxu0 %v85
    %v124 = vpop.f32.mrf.mxu0
    %v125 = vadd.f32 0.0, %v124
    %126 = vdwg.mxu0
    %127 = vmatpush.msra.mxu0 0.0
    %128 = vmatpush.msra.mxu0 0.0
    %129 = vmatpush.msra.mxu0 0.0
    %130 = vmatpush.msra.mxu0 0.0
    %131 = vmatpush.msra.mxu0 0.0
    %132 = vmatpush.msra.mxu0 0.0
    %133 = vmatpush.msra.mxu0 0.0
    %134 = vmatpush.msra.mxu0 0.0
    %135 = vmatpush.msra.mxu0 0.0
    %136 = vmatpush.msra.mxu0 0.0
    %137 = vmatpush.msra.mxu0 0.0
    %138 = vmatpush.msra.mxu0 0.0
    %139 = vmatpush.msra.mxu0 %v81
    %140 = vmatpush.msra.mxu0 %v77
    %141 = vmatpush.msra.mxu0 %v73
    %142 = vmatpush.msra.mxu0 %v69
    %143 = vmatmul.f32.gmra.mxu0 %v85
    %v144 = vpop.f32.mrf.mxu0
    %v145 = vadd.f32 0.0, %v144
    %146 = vdwg.mxu0
    %147 = vmatpush.msra.mxu0 0.0
    %148 = vmatpush.msra.mxu0 0.0
    %149 = vmatpush.msra.mxu0 0.0
    %150 = vmatpush.msra.mxu0 0.0
    %151 = vmatpush.msra.mxu0 0.0
    %152 = vmatpush.msra.mxu0 0.0
    %153 = vmatpush.msra.mxu0 0.0
    %154 = vmatpush.msra.mxu0 0.0
    %155 = vmatpush.msra.mxu0 0.0
    %156 = vmatpush.msra.mxu0 0.0
    %157 = vmatpush.msra.mxu0 0.0
    %158 = vmatpush.msra.mxu0 0.0
    %159 = vmatpush.msra.mxu0 %v82
    %160 = vmatpush.msra.mxu0 %v78
    %161 = vmatpush.msra.mxu0 %v74
    %162 = vmatpush.msra.mxu0 %v70
    %163 = vmatmul.f32.gmra.mxu0 %v85
    %v164 = vpop.f32.mrf.mxu0
    %v165 = vadd.f32 0.0, %v164
    %166 = vdwg.mxu0
    %vm167 = vcmask 130048
    %v169 = vsel %vm167, %v57, 0
    %171 = vmatpush.msra.mxu0 0.0
    %172 = vmatpush.msra.mxu0 0.0
    %173 = vmatpush.msra.mxu0 0.0
    %174 = vmatpush.msra.mxu0 0.0
    %175 = vmatpush.msra.mxu0 0.0
    %176 = vmatpush.msra.mxu0 0.0
    %177 = vmatpush.msra.mxu0 0.0
    %178 = vmatpush.msra.mxu0 0.0
    %179 = vmatpush.msra.mxu0 0.0
    %180 = vmatpush.msra.mxu0 0.0
    %181 = vmatpush.msra.mxu0 0.0
    %182 = vmatpush.msra.mxu0 0.0
    %183 = vmatpush.msra.mxu0 0.0
    %184 = vmatpush.msra.mxu0 0.0
    %185 = vmatpush.msra.mxu0 %v62
    %186 = vmatpush.msra.mxu0 %v58
    %187 = vmatmul.f32.gmra.mxu0 %v169
    %v188 = vpop.f32.mrf.mxu0
    %v189 = vadd.f32 %v105, %v188
    %190 = vdwg.mxu0
    %191 = vmatpush.msra.mxu0 0.0
    %192 = vmatpush.msra.mxu0 0.0
    %193 = vmatpush.msra.mxu0 0.0
    %194 = vmatpush.msra.mxu0 0.0
    %195 = vmatpush.msra.mxu0 0.0
    %196 = vmatpush.msra.mxu0 0.0
    %197 = vmatpush.msra.mxu0 0.0
    %198 = vmatpush.msra.mxu0 0.0
    %199 = vmatpush.msra.mxu0 0.0
    %200 = vmatpush.msra.mxu0 0.0
    %201 = vmatpush.msra.mxu0 0.0
    %202 = vmatpush.msra.mxu0 0.0
    %203 = vmatpush.msra.mxu0 0.0
    %204 = vmatpush.msra.mxu0 0.0
    %205 = vmatpush.msra.mxu0 %v63
    %206 = vmatpush.msra.mxu0 %v59
    %207 = vmatmul.f32.gmra.mxu0 %v169
    %v208 = vpop.f32.mrf.mxu0
    %v209 = vadd.f32 %v125, %v208
    %210 = vdwg.mxu0
    %211 = vmatpush.msra.mxu0 0.0
    %212 = vmatpush.msra.mxu0 0.0
    %213 = vmatpush.msra.mxu0 0.0
    %214 = vmatpush.msra.mxu0 0.0
    %215 = vmatpush.msra.mxu0 0.0
    %216 = vmatpush.msra.mxu0 0.0
    %217 = vmatpush.msra.mxu0 0.0
    %218 = vmatpush.msra.mxu0 0.0
    %219 = vmatpush.msra.mxu0 0.0
    %220 = vmatpush.msra.mxu0 0.0
    %221 = vmatpush.msra.mxu0 0.0
    %222 = vmatpush.msra.mxu0 0.0
    %223 = vmatpush.msra.mxu0 0.0
    %224 = vmatpush.msra.mxu0 0.0
    %225 = vmatpush.msra.mxu0 %v64
    %226 = vmatpush.msra.mxu0 %v60
    %227 = vmatmul.f32.gmra.mxu0 %v169
    %v228 = vpop.f32.mrf.mxu0
    %v229 = vadd.f32 %v145, %v228
    %230 = vdwg.mxu0
    %231 = vmatpush.msra.mxu0 0.0
    %232 = vmatpush.msra.mxu0 0.0
    %233 = vmatpush.msra.mxu0 0.0
    %234 = vmatpush.msra.mxu0 0.0
    %235 = vmatpush.msra.mxu0 0.0
    %236 = vmatpush.msra.mxu0 0.0
    %237 = vmatpush.msra.mxu0 0.0
    %238 = vmatpush.msra.mxu0 0.0
    %239 = vmatpush.msra.mxu0 0.0
    %240 = vmatpush.msra.mxu0 0.0
    %241 = vmatpush.msra.mxu0 0.0
    %242 = vmatpush.msra.mxu0 0.0
    %243 = vmatpush.msra.mxu0 0.0
    %244 = vmatpush.msra.mxu0 0.0
    %245 = vmatpush.msra.mxu0 %v65
    %246 = vmatpush.msra.mxu0 %v61
    %247 = vmatmul.f32.gmra.mxu0 %v169
    %v248 = vpop.f32.mrf.mxu0
    %v249 = vadd.f32 %v165, %v248
    %250 = vdwg.mxu0
    %v251 = vld [vmem:[%s5] sm:$0xf]
    %v253 = vperm.slane %v251, 0
    %v254 = vperm.slane %v251, 1
    %v255 = vperm.slane %v251, 2
    %v256 = vperm.slane %v251, 3
    %v261 = vadd.f32 %v189, %v253
    %v262 = vadd.f32 %v209, %v254
    %v263 = vadd.f32 %v229, %v255
    %v264 = vadd.f32 %v249, %v256
    %v265 = vmul.f32 %v261, 0.5
    %v266 = vtanh.pop %v265
    %v267 = vmul.f32 %v266, 0.5
    %v268 = vadd.f32 %v267, 0.5
    %v269 = vmul.f32 %v262, 0.5
    %v270 = vtanh.pop %v269
    %v271 = vmul.f32 %v270, 0.5
    %v272 = vadd.f32 %v271, 0.5
    %v273 = vmul.f32 %v263, 0.5
    %v274 = vtanh.pop %v273
    %v275 = vmul.f32 %v274, 0.5
    %v276 = vadd.f32 %v275, 0.5
    %v277 = vtanh.pop %v264
    %v278 = vld [vmem:[%s2] sm:$0xff]
    %v279 = vmul.f32 %v268, %v278
    %v280 = vmul.f32 %v272, %v277
    %v281 = vadd.f32 %v279, %v280
    %v282 = vtanh.pop %v281
    %v283 = vmul.f32 %v276, %v282
    %284 = vst [vmem:[%s6] sm:$0xff] %v283
    %285 = vst [vmem:[%s7] sm:$0xff] %v281
    // Predicated region
    $region34: #{lstm_cell.1} parent=1 // pred_check
      _
    $region35: #{lstm_cell.1} parent=1 // pred_check_branch
      %287 = sbr.rel (0) target = $region37
    $region36: #{lstm_cell.1} parent=1 // pred_region
      _
    $region37: #{lstm_cell.1} parent=1 // pred_fallthru
      _
    // Predicated region
    $region38: #{lstm_cell.1} parent=1 // pred_check
      _
    $region39: #{lstm_cell.1} parent=1 // pred_check_branch
      %289 = sbr.rel (0) target = $region41
    $region40: #{lstm_cell.1} parent=1 // pred_region
      _
    $region41: #{lstm_cell.1} parent=1 // pred_fallthru
      _
    // Predicated region
    $region42: #{lstm_cell.1} parent=1 // pred_check
      _
    $region43: #{lstm_cell.1} parent=1 // pred_check_branch
      %291 = sbr.rel (0) target = $region45
    $region44: #{lstm_cell.1} parent=1 // pred_region
      _
    $region45: #{lstm_cell.1} parent=1 // pred_fallthru
      _
    // Predicated region
    $region46: #{lstm_cell.1} parent=1 // pred_check
      _
    $region47: #{lstm_cell.1} parent=1 // pred_check_branch
      %293 = sbr.rel (0) target = $region49
    $region48: #{lstm_cell.1} parent=1 // pred_region
      _
    $region49: #{lstm_cell.1} parent=1 // pred_fallthru
      _
    %294 = vsyncpa [#allocation3], 1
    %295 = vsyncpa [#allocation5], 1

</llo_original>
